<compile_context>
chip_gen: v7x
topology: tpu7x:2x2x1
jax: 0.10.0
libtpu: 0.0.40
codegen_flags: <defaults>
</compile_context>

<pallas_src>
import functools

import jax
import jax.numpy as jnp
from jax.experimental import pallas as pl
from jax.experimental.pallas import tpu as pltpu


def _cbbce_kernel(p_ref, y_ref, o_ref, *, weight1, binary_targets,
                  rows_per_tile, steps, total_rows):
    """One grid step: (rows_per_tile, D) tile -> accumulate into o_ref (1,8,D)."""
    s = pl.program_id(0)          # parallel split (TensorCore shard)
    i = pl.program_id(1)          # sequential reduction step within the split

    # Zero this split's resident output block on its first step.
    @pl.when(i == 0)
    def _():
        o_ref[...] = jnp.zeros_like(o_ref)

    p = p_ref[...].astype(jnp.float32)
    y = y_ref[...].astype(jnp.float32)
    w1 = jnp.float32(weight1)

    if binary_targets:
        # Fast path (valid only for y in {0,1}): one transcendental / element.
        p_eff = jnp.where(y >= 0.5, p, 1.0 - p)
        nll = -jnp.maximum(jnp.log(p_eff), -100.0)
        bce_w = jnp.where(y >= 0.5, w1 * nll, nll)
    else:
        # General path: matches F.binary_cross_entropy (log terms clamped at
        # -100); log1p(-p) avoids cancellation as p -> 1.
        log_p = jnp.maximum(jnp.log(p), -100.0)
        log_1mp = jnp.maximum(jnp.log1p(-p), -100.0)
        # -(y*log_p + (1-y)*log_1mp), refactored to 3 VPU ops.
        bce = y * (log_1mp - log_p) - log_1mp
        # Fold the class-balance weight into the select.
        bce_w = jnp.where(y >= 0.9999, w1 * bce, bce)

    tb = rows_per_tile // 8
    d = bce_w.shape[-1]
    # Unclamped linear row offset of this step (the index_map clamps the DMA
    # source, but masking must use the *logical* offset).
    row_start = (s * steps + i) * rows_per_tile
    interior = row_start + rows_per_tile <= total_rows

    # Interior steps: straight major-axis reduce (pure VPU adds, no mask).
    @pl.when(interior)
    def _():
        o_ref[0] += bce_w.reshape(tb, 8, d).sum(axis=0)

    # Boundary / fully-out-of-range steps: mask invalid rows before reducing.
    # (Out-of-range rows hold unspecified data; the select makes them exact 0.)
    @pl.when(jnp.logical_not(interior))
    def _():
        valid = total_rows - row_start            # may be <= 0 (fully OOB step)
        rid = jax.lax.broadcasted_iota(jnp.int32, bce_w.shape, 0)
        masked = jnp.where(rid < valid, bce_w, 0.0)
        o_ref[0] += masked.reshape(tb, 8, d).sum(axis=0)


def _row_quantum(dtype):
    # Sublane packing factor: f32 -> 8, bf16/f16 -> 16, int8/bool -> 32.
    return 8 * max(1, 4 // jnp.dtype(dtype).itemsize)


def cbbce_loss(y_pred, y_true, *, ratio, beta=0.99, binary_targets=False,
               target_tile_bytes=4 * 1024 * 1024,
               vmem_limit_bytes=48 * 1024 * 1024):
    """Class-Balanced BCE loss. y_pred/y_true: [batch, dim]; returns scalar."""
    assert y_pred.ndim == 2 and y_true.shape == y_pred.shape
    weight1 = (1.0 - beta) / (1.0 - beta ** ratio)
    M, D = y_pred.shape
    total_n = M * D

    # --- tile-size selection ------------------------------------------------
    # ~4 MiB (f32-equivalent) per input tile: 2 inputs x 2 pipeline buffers
    # -> ~16 MiB of double-buffered VMEM plus bounded body temporaries; fits
    # comfortably under the explicit 48 MiB limit on every generation
    # (v5e/v6e: 128 MiB physical, v7x: 64 MiB physical) while keeping the
    # ~0.35 us per-grid-step overhead small even at v7x's ~3.2 TB/s.
    # TODO(synk): for extremely large `dim` (single 8-row tile > budget), also
    # tile along D with a lane mask instead of only tiling rows.
    q = max(_row_quantum(y_pred.dtype), _row_quantum(y_true.dtype))
    rows_budget = max(q, (target_tile_bytes // (D * 4)) // q * q)
    rows_per_tile = min(rows_budget, -(-M // q) * q)

    n_tiles = -(-M // rows_per_tile)
    # Leading "parallel" axis lets a 2-TC chip stream half the rows per core.
    # (If a trace shows it not sharding on v7x, switch to pltpu.CORE_PARALLEL.)
    n_split = 2 if n_tiles >= 2 else 1
    steps = -(-n_tiles // n_split)
    last_block = n_tiles - 1

    kernel = functools.partial(
        _cbbce_kernel, weight1=weight1, binary_targets=binary_targets,
        rows_per_tile=rows_per_tile, steps=steps, total_rows=M)

    # Clamp the DMA source block so steps past the last real tile (possible
    # when n_split*steps > n_tiles) never address out-of-range HBM; the kernel
    # masks their contribution to exactly zero.
    def in_map(s, i):
        return (jnp.minimum(s * steps + i, last_block), 0)

    partials = pl.pallas_call(
        kernel,
        out_shape=jax.ShapeDtypeStruct((n_split, 8, D), jnp.float32),
        grid_spec=pltpu.PrefetchScalarGridSpec(
            num_scalar_prefetch=0,
            grid=(n_split, steps),
            in_specs=[
                pl.BlockSpec((rows_per_tile, D), in_map),
                pl.BlockSpec((rows_per_tile, D), in_map),
            ],
            # Output block index is constant across the reduction axis -> the
            # (1, 8, D) block stays VMEM-resident and doubles as accumulator.
            out_specs=pl.BlockSpec((1, 8, D), lambda s, i: (s, 0, 0)),
        ),
        compiler_params=pltpu.CompilerParams(
            dimension_semantics=("parallel", "arbitrary"),
            vmem_limit_bytes=vmem_limit_bytes,
        ),
    )(y_pred, y_true)

    # Tiny final cross-lane reduce + mean outside the kernel.
    return jnp.sum(partials) / jnp.float32(total_n)


def cbbce_ref(y_pred, y_true, *, ratio, beta=0.99):
    # Pure-JAX reference (matches the PyTorch module).
    weight1 = (1.0 - beta) / (1.0 - beta ** ratio)
    log_p = jnp.maximum(jnp.log(y_pred), -100.0)
    log_1mp = jnp.maximum(jnp.log1p(-y_pred), -100.0)
    bce = -(y_true * log_p + (1.0 - y_true) * log_1mp)
    w = jnp.where(y_true >= 0.9999, weight1, 1.0)
    return jnp.mean(bce * w)


if __name__ == "__main__":
    key = jax.random.PRNGKey(0)
    k1, k2, k3, k4 = jax.random.split(key, 4)

    ratio = 0.1   # positive-sample ratio (dataset statistic)
    beta = 0.99

    # Case 1: small aligned shape (single tile, single split).
    batch, dim = 16, 256
    y_pred = jax.nn.sigmoid(jax.random.normal(k1, (batch, dim), jnp.float32))
    y_true = (jax.random.uniform(k2, (batch, dim)) < 0.1).astype(jnp.float32)

    loss = cbbce_loss(y_pred, y_true, ratio=ratio, beta=beta)
    jax.block_until_ready(loss)
    ref = cbbce_ref(y_pred, y_true, ratio=ratio, beta=beta)
    assert jnp.allclose(loss, ref, rtol=1e-5, atol=1e-6), (loss, ref)

    # Binary-target fast path (one transcendental per element).
    loss_bin = cbbce_loss(y_pred, y_true, ratio=ratio, beta=beta,
                          binary_targets=True)
    jax.block_until_ready(loss_bin)
    assert jnp.allclose(loss_bin, ref, rtol=1e-5, atol=1e-6), (loss_bin, ref)

    # Case 2: ragged batch with tiny tiles -- exercises the in-kernel tail
    # masking AND the clamped fully-out-of-range step (n_tiles=3, 2 splits).
    batch2, dim2 = 20, 256
    y_pred2 = jax.nn.sigmoid(jax.random.normal(k3, (batch2, dim2), jnp.float32))
    y_true2 = (jax.random.uniform(k4, (batch2, dim2)) < 0.1).astype(jnp.float32)
    loss2 = cbbce_loss(y_pred2, y_true2, ratio=ratio, beta=beta,
                       target_tile_bytes=8 * 256 * 4)
    jax.block_until_ready(loss2)
    ref2 = cbbce_ref(y_pred2, y_true2, ratio=ratio, beta=beta)
    assert jnp.allclose(loss2, ref2, rtol=1e-5, atol=1e-6), (loss2, ref2)

    print("KERNEL_OK")
</pallas_src>

<mosaic_0001>
module attributes {stable_mosaic.version = 11 : i64} {
  func.func @_cbbce_kernel(%arg0: i32, %arg1: i32, %arg2: memref<16x256xf32, #tpu.memory_space<vmem>>, %arg3: memref<16x256xf32, #tpu.memory_space<vmem>>, %arg4: memref<1x8x256xf32, #tpu.memory_space<vmem>>) attributes {dimension_semantics = [#tpu.dimension_semantics<parallel>, #tpu.dimension_semantics<arbitrary>], iteration_bounds = array<i64: 1, 1>, scalar_prefetch = 0 : i64, scratch_operands = 0 : i64, tpu.core_type = #tpu.core_type<tc>, window_params = [{transform_indices = @transform_0, window_bounds = array<i64: 16, 256>}, {transform_indices = @transform_1, window_bounds = array<i64: 16, 256>}, {transform_indices = @transform_2, window_bounds = array<i64: 1, 8, 256>}]} {
    %c0_i32 = arith.constant 0 : i32
    %0 = arith.cmpi eq, %arg1, %c0_i32 : i32
    %1 = arith.extui %0 : i1 to i32
    %c0_i32_0 = arith.constant 0 : i32
    %2 = arith.cmpi ne, %1, %c0_i32_0 : i32
    scf.if %2 {
      %cst_12 = arith.constant 0.000000e+00 : f32
      %31 = vector.broadcast %cst_12 : f32 to vector<1x8x256xf32>
      %c0_13 = arith.constant 0 : index
      %c0_14 = arith.constant 0 : index
      %c0_15 = arith.constant 0 : index
      %32 = vector.load %arg4[%c0_13, %c0_14, %c0_15] : memref<1x8x256xf32, #tpu.memory_space<vmem>>, vector<1x8x256xf32>
      tpu.vector_store %arg4[%c0_13, %c0_14, %c0_15], %31 {strides = array<i32>} : memref<1x8x256xf32, #tpu.memory_space<vmem>>, vector<1x8x256xf32>,
    } else {
    }
    %c0 = arith.constant 0 : index
    %c0_1 = arith.constant 0 : index
    %3 = vector.load %arg2[%c0, %c0_1] : memref<16x256xf32, #tpu.memory_space<vmem>>, vector<16x256xf32>
    %c0_2 = arith.constant 0 : index
    %c0_3 = arith.constant 0 : index
    %4 = vector.load %arg3[%c0_2, %c0_3] : memref<16x256xf32, #tpu.memory_space<vmem>>, vector<16x256xf32>
    %5 = math.log %3 : vector<16x256xf32>
    %cst = arith.constant -1.000000e+02 : f32
    %6 = vector.broadcast %cst : f32 to vector<16x256xf32>
    %7 = arith.maximumf %5, %6 : vector<16x256xf32>
    %cst_4 = arith.constant 0.000000e+00 : f32
    %8 = vector.broadcast %cst_4 : f32 to vector<16x256xf32>
    %9 = arith.subf %8, %3 : vector<16x256xf32>
    %10 = math.log1p %9 : vector<16x256xf32>
    %cst_5 = arith.constant -1.000000e+02 : f32
    %11 = vector.broadcast %cst_5 : f32 to vector<16x256xf32>
    %12 = arith.maximumf %10, %11 : vector<16x256xf32>
    %13 = arith.subf %12, %7 : vector<16x256xf32>
    %14 = arith.mulf %4, %13 : vector<16x256xf32>
    %15 = arith.subf %14, %12 : vector<16x256xf32>
    %cst_6 = arith.constant 0.999899983 : f32
    %16 = vector.broadcast %cst_6 : f32 to vector<16x256xf32>
    %17 = arith.cmpf oge, %4, %16 : vector<16x256xf32>
    %cst_7 = arith.constant 9.95491695 : f32
    %18 = vector.broadcast %cst_7 : f32 to vector<16x256xf32>
    %19 = arith.mulf %18, %15 : vector<16x256xf32>
    %20 = arith.select %17, %19, %15 : vector<16x256xi1>, vector<16x256xf32>
    %c1_i32 = arith.constant 1 : i32
    %21 = arith.muli %arg0, %c1_i32 : i32
    %22 = arith.addi %21, %arg1 : i32
    %c16_i32 = arith.constant 16 : i32
    %23 = arith.muli %22, %c16_i32 : i32
    %c16_i32_8 = arith.constant 16 : i32
    %24 = arith.addi %23, %c16_i32_8 : i32
    %c16_i32_9 = arith.constant 16 : i32
    %25 = arith.cmpi sle, %24, %c16_i32_9 : i32
    %26 = arith.extui %25 : i1 to i32
    %c0_i32_10 = arith.constant 0 : i32
    %27 = arith.cmpi ne, %26, %c0_i32_10 : i32
    scf.if %27 {
      %c0_12 = arith.constant 0 : index
      %c0_13 = arith.constant 0 : index
      %c0_14 = arith.constant 0 : index
      %31 = vector.load %arg4[%c0_12, %c0_13, %c0_14] : memref<1x8x256xf32, #tpu.memory_space<vmem>>, vector<1x8x256xf32>
      %32 = vector.shape_cast %31 : vector<1x8x256xf32> to vector<8x256xf32>
      %33 = vector.shape_cast %20 : vector<16x256xf32> to vector<2x8x256xf32>
      %cst_15 = arith.constant dense<0.000000e+00> : vector<8x256xf32>
      %34 = vector.multi_reduction <add>, %33, %cst_15 [0] : vector<2x8x256xf32> to vector<8x256xf32>
      %35 = arith.addf %32, %34 : vector<8x256xf32>
      %c0_16 = arith.constant 0 : index
      %c0_17 = arith.constant 0 : index
      %c0_18 = arith.constant 0 : index
      %36 = vector.load %arg4[%c0_16, %c0_17, %c0_18] : memref<1x8x256xf32, #tpu.memory_space<vmem>>, vector<1x8x256xf32>
      %37 = vector.shape_cast %36 : vector<1x8x256xf32> to vector<8x256xf32>
      %38 = vector.shape_cast %35 : vector<8x256xf32> to vector<1x8x256xf32>
      tpu.vector_store %arg4[%c0_16, %c0_17, %c0_18], %38 {strides = array<i32>} : memref<1x8x256xf32, #tpu.memory_space<vmem>>, vector<1x8x256xf32>,
    } else {
    }
    %true = arith.constant true
    %28 = arith.xori %25, %true : i1
    %29 = arith.extui %28 : i1 to i32
    %c0_i32_11 = arith.constant 0 : i32
    %30 = arith.cmpi ne, %29, %c0_i32_11 : i32
    scf.if %30 {
      %c16_i32_12 = arith.constant 16 : i32
      %31 = arith.subi %c16_i32_12, %23 : i32
      %32 = tpu.iota {dimensions = array<i32: 0>} : vector<16x256xi32>
      %33 = vector.broadcast %31 : i32 to vector<16x256xi32>
      %34 = arith.cmpi slt, %32, %33 : vector<16x256xi32>
      %cst_13 = arith.constant 0.000000e+00 : f32
      %35 = vector.broadcast %cst_13 : f32 to vector<16x256xf32>
      %36 = arith.select %34, %20, %35 : vector<16x256xi1>, vector<16x256xf32>
      %c0_14 = arith.constant 0 : index
      %c0_15 = arith.constant 0 : index
      %c0_16 = arith.constant 0 : index
      %37 = vector.load %arg4[%c0_14, %c0_15, %c0_16] : memref<1x8x256xf32, #tpu.memory_space<vmem>>, vector<1x8x256xf32>
      %38 = vector.shape_cast %37 : vector<1x8x256xf32> to vector<8x256xf32>
      %39 = vector.shape_cast %36 : vector<16x256xf32> to vector<2x8x256xf32>
      %cst_17 = arith.constant dense<0.000000e+00> : vector<8x256xf32>
      %40 = vector.multi_reduction <add>, %39, %cst_17 [0] : vector<2x8x256xf32> to vector<8x256xf32>
      %41 = arith.addf %38, %40 : vector<8x256xf32>
      %c0_18 = arith.constant 0 : index
      %c0_19 = arith.constant 0 : index
      %c0_20 = arith.constant 0 : index
      %42 = vector.load %arg4[%c0_18, %c0_19, %c0_20] : memref<1x8x256xf32, #tpu.memory_space<vmem>>, vector<1x8x256xf32>
      %43 = vector.shape_cast %42 : vector<1x8x256xf32> to vector<8x256xf32>
      %44 = vector.shape_cast %41 : vector<8x256xf32> to vector<1x8x256xf32>
      tpu.vector_store %arg4[%c0_18, %c0_19, %c0_20], %44 {strides = array<i32>} : memref<1x8x256xf32, #tpu.memory_space<vmem>>, vector<1x8x256xf32>,
    } else {
    }
    return
  }
  func.func @transform_0(%arg0: i32, %arg1: i32) -> (i32, i32) {
    %c1_i32 = arith.constant 1 : i32
    %0 = arith.muli %arg0, %c1_i32 : i32
    %1 = arith.addi %0, %arg1 : i32
    %c0_i32 = arith.constant 0 : i32
    %2 = arith.minsi %1, %c0_i32 : i32
    %c0_i32_0 = arith.constant 0 : i32
    %c0_i32_1 = arith.constant 0 : i32
    return %2, %c0_i32_0 : i32, i32
  }
  func.func @transform_1(%arg0: i32, %arg1: i32) -> (i32, i32) {
    %c1_i32 = arith.constant 1 : i32
    %0 = arith.muli %arg0, %c1_i32 : i32
    %1 = arith.addi %0, %arg1 : i32
    %c0_i32 = arith.constant 0 : i32
    %2 = arith.minsi %1, %c0_i32 : i32
    %c0_i32_0 = arith.constant 0 : i32
    %c0_i32_1 = arith.constant 0 : i32
    return %2, %c0_i32_0 : i32, i32
  }
  func.func @transform_2(%arg0: i32, %arg1: i32) -> (i32, i32, i32) {
    %c0_i32 = arith.constant 0 : i32
    %c0_i32_0 = arith.constant 0 : i32
    %c0_i32_1 = arith.constant 0 : i32
    return %arg0, %c0_i32, %c0_i32_0 : i32, i32, i32
  }
}

</mosaic_0001>

<llo_original>
// kernel: tpu_custom_call.1
$region0: #{tpu_custom_call.1}
  #allocation0 [shape = 'u32[]', space=smem, size = 0x4, offset = 0x4, fixed_abs, tag = 'smem constant byte address 0x4 - core index']
  #allocation1 [shape = 'u32[144,128]{1,0:T(1,128)}', space=vmem, size = 0x12000, scoped, tag = 'internal scratch']
  %s0 = inlined_call_operand.hbm [shape: f32[16,256], index: 0, kind: input, shape index: {}]
  %s1 = inlined_call_operand.hbm [shape: f32[16,256], index: 1, kind: input, shape index: {}]
  %s2 = inlined_call_operand.hbm [shape: f32[1,8,256], index: 2, kind: output, shape index: {}]
  %s3 = sld [smem:[#allocation0]]
  $region38: #{tpu_custom_call.1} parent=0
    _
  %s5 = ssub.s32 1, %s3
  %s6 = scalar_select 0, %s5, %s3
  $region1: #{tpu_custom_call.1} parent=0
    #allocation2 [shape = 'u8[16384]{0}', space=vmem, size = 0x4000, scoped, tag = 'input window, operand 0, single buffered']
    #allocation3 [shape = 's32[1]{0}', space=sflag, size = 0x4, scoped, tag = 'scoped memory for tpu_custom_call.1']
    #allocation4 [shape = 's32[1]{0}', space=sflag, size = 0x4, scoped, tag = 'scoped memory for tpu_custom_call.1']
    #allocation5 [shape = 'u8[16384]{0}', space=vmem, size = 0x4000, scoped, tag = 'input window, operand 1, single buffered']
    #allocation6 [shape = 's32[1]{0}', space=sflag, size = 0x4, scoped, tag = 'scoped memory for tpu_custom_call.1']
    #allocation7 [shape = 'u8[8192]{0}', space=vmem, size = 0x2000, scoped, tag = 'output window, operand 0, single buffered']
    %7 = vsyncpa [#allocation3], 0
    %8 = vsyncpa [#allocation6], 0
    %9 = vsyncpa [#allocation4], 0
    // Predicated region
    $region2: #{tpu_custom_call.1} parent=1 // pred_check
      _
    $region3: #{tpu_custom_call.1} parent=1 // pred_check_branch
      %11 = sbr.rel (0) target = $region5
    $region4: #{tpu_custom_call.1} parent=1 // pred_region
      %s12 = sadd.s32 0, 0
      %p13 = scmp.lt.s32.totalorder %s12, 0
      %s14 = scalar_select %p13, %s12, 0
      %s15 = smul.u32 2, %s14
      %s17 = ssub.s32 512, 512
      %18 = vsyncadd [#allocation3], %s17
      %s19 = smul.addr %s15, 2
      %s20 = smul.addr %s19, 128
      %s21 = scalar_lea.hbm %s0, %s20
      %s22 = sshll.u32 [#allocation2], 4
      %s23 = int_to_ptr.vmem [resolvable:$true] %s22
      %28 = dma.hbm_to_vmem [thread:$0]  %s21, 512, %s23, [#allocation3], 256, 256, 16
    $region5: #{tpu_custom_call.1} parent=1 // pred_fallthru
      _
    // Predicated region
    $region6: #{tpu_custom_call.1} parent=1 // pred_check
      _
    $region7: #{tpu_custom_call.1} parent=1 // pred_check_branch
      %30 = sbr.rel (0) target = $region9
    $region8: #{tpu_custom_call.1} parent=1 // pred_region
      %s31 = sadd.s32 0, 0
      %p32 = scmp.lt.s32.totalorder %s31, 0
      %s33 = scalar_select %p32, %s31, 0
      %s34 = smul.u32 2, %s33
      %s36 = ssub.s32 512, 512
      %37 = vsyncadd [#allocation6], %s36
      %s38 = smul.addr %s34, 2
      %s39 = smul.addr %s38, 128
      %s40 = scalar_lea.hbm %s1, %s39
      %s41 = sshll.u32 [#allocation5], 4
      %s42 = int_to_ptr.vmem [resolvable:$true] %s41
      %47 = dma.hbm_to_vmem [thread:$0]  %s40, 512, %s42, [#allocation6], 256, 256, 16
    $region9: #{tpu_custom_call.1} parent=1 // pred_fallthru
      _
    // Predicated region
    $region10: #{tpu_custom_call.1} parent=1 // pred_check
      _
    $region11: #{tpu_custom_call.1} parent=1 // pred_check_branch
      %49 = sbr.rel (0) target = $region13
    $region12: #{tpu_custom_call.1} parent=1 // pred_region
      %50 = dma.done [#allocation3], 512
    $region13: #{tpu_custom_call.1} parent=1 // pred_fallthru
      _
    // Predicated region
    $region14: #{tpu_custom_call.1} parent=1 // pred_check
      _
    $region15: #{tpu_custom_call.1} parent=1 // pred_check_branch
      %52 = sbr.rel (0) target = $region17
    $region16: #{tpu_custom_call.1} parent=1 // pred_region
      %53 = dma.done [#allocation6], 512
    $region17: #{tpu_custom_call.1} parent=1 // pred_fallthru
      _
    %s54 = sadd.s32 0, 0
    %p55 = scmp.lt.s32.totalorder %s54, 0
    %s56 = scalar_select %p55, %s54, 0
    %s57 = smul.u32 2, %s56
    %s58 = sadd.s32 0, 0
    %p59 = scmp.lt.s32.totalorder %s58, 0
    %s60 = scalar_select %p59, %s58, 0
    %s61 = smul.u32 2, %s60
    %p62 = scmp.eq.s32.totalorder 0, 0
    // Predicated region
    $region18: #{tpu_custom_call.1} parent=1 // pred_check
      %p63 = pneg %p62
    $region19: #{tpu_custom_call.1} parent=1 // pred_check_branch
      %65 = sbr.rel (%p63) target = $region21
    $region20: #{tpu_custom_call.1} parent=1 // pred_region
      %66 = vst [vmem:[#allocation7] sm:$0xff] 0.0
      %67 = vst [vmem:[#allocation7 + $0x8] sm:$0xff] 0.0
    $region21: #{tpu_custom_call.1} parent=1 // pred_fallthru
      _
    %v68 = vld [vmem:[#allocation2] sm:$0xff]
    %v69 = vld [vmem:[#allocation2 + $0x8] sm:$0xff]
    %v70 = vld [vmem:[#allocation2 + $0x10] sm:$0xff]
    %v71 = vld [vmem:[#allocation2 + $0x18] sm:$0xff]
    %v72 = vld [vmem:[#allocation5] sm:$0xff]
    %v73 = vld [vmem:[#allocation5 + $0x8] sm:$0xff]
    %v74 = vld [vmem:[#allocation5 + $0x10] sm:$0xff]
    %v75 = vld [vmem:[#allocation5 + $0x18] sm:$0xff]
    %v76 = vlog2.pop %v68
    %v77 = vmul.f32 %v76, 0.6931472
    %v78 = vlog2.pop %v69
    %v79 = vmul.f32 %v78, 0.6931472
    %v80 = vlog2.pop %v70
    %v81 = vmul.f32 %v80, 0.6931472
    %v82 = vlog2.pop %v71
    %v83 = vmul.f32 %v82, 0.6931472
    %v84 = vmax.f32 %v77, -100.0
    %v85 = vmax.f32 %v79, -100.0
    %v86 = vmax.f32 %v81, -100.0
    %v87 = vmax.f32 %v83, -100.0
    %v88 = vsub.f32 0.0, %v68
    %v89 = vsub.f32 0.0, %v69
    %v90 = vsub.f32 0.0, %v70
    %v91 = vsub.f32 0.0, %v71
    %v92 = vadd.f32 %v88, 1.0
    %v93 = vlog2.pop %v92
    %v94 = vmul.f32 %v93, 0.6931472
    %v95 = vmul.f32 -0.5, %v88
    %v96 = vadd.f32 %v95, 1.0
    %v97 = vmul.f32 %v96, %v88
    %v98 = vand.u32 2147483647, %v88
    %vm99 = vcmp.lt.f32.partialorder %v98, 0.0004427343
    %v100 = vsel %vm99, %v97, %v94
    %v101 = vadd.f32 %v89, 1.0
    %v102 = vlog2.pop %v101
    %v103 = vmul.f32 %v102, 0.6931472
    %v104 = vmul.f32 -0.5, %v89
    %v105 = vadd.f32 %v104, 1.0
    %v106 = vmul.f32 %v105, %v89
    %v107 = vand.u32 2147483647, %v89
    %vm108 = vcmp.lt.f32.partialorder %v107, 0.0004427343
    %v109 = vsel %vm108, %v106, %v103
    %v110 = vadd.f32 %v90, 1.0
    %v111 = vlog2.pop %v110
    %v112 = vmul.f32 %v111, 0.6931472
    %v113 = vmul.f32 -0.5, %v90
    %v114 = vadd.f32 %v113, 1.0
    %v115 = vmul.f32 %v114, %v90
    %v116 = vand.u32 2147483647, %v90
    %vm117 = vcmp.lt.f32.partialorder %v116, 0.0004427343
    %v118 = vsel %vm117, %v115, %v112
    %v119 = vadd.f32 %v91, 1.0
    %v120 = vlog2.pop %v119
    %v121 = vmul.f32 %v120, 0.6931472
    %v122 = vmul.f32 -0.5, %v91
    %v123 = vadd.f32 %v122, 1.0
    %v124 = vmul.f32 %v123, %v91
    %v125 = vand.u32 2147483647, %v91
    %vm126 = vcmp.lt.f32.partialorder %v125, 0.0004427343
    %v127 = vsel %vm126, %v124, %v121
    %v128 = vmax.f32 %v100, -100.0
    %v129 = vmax.f32 %v109, -100.0
    %v130 = vmax.f32 %v118, -100.0
    %v131 = vmax.f32 %v127, -100.0
    %v132 = vsub.f32 %v128, %v84
    %v133 = vsub.f32 %v129, %v85
    %v134 = vsub.f32 %v130, %v86
    %v135 = vsub.f32 %v131, %v87
    %v136 = vmul.f32 %v72, %v132
    %v137 = vmul.f32 %v73, %v133
    %v138 = vmul.f32 %v74, %v134
    %v139 = vmul.f32 %v75, %v135
    %v140 = vsub.f32 %v136, %v128
    %v141 = vsub.f32 %v137, %v129
    %v142 = vsub.f32 %v138, %v130
    %v143 = vsub.f32 %v139, %v131
    %vm144 = vcmp.ge.f32.partialorder %v72, 0.9999
    %vm145 = vcmp.ge.f32.partialorder %v73, 0.9999
    %vm146 = vcmp.ge.f32.partialorder %v74, 0.9999
    %vm147 = vcmp.ge.f32.partialorder %v75, 0.9999
    %v148 = vmul.f32 %v140, 9.954917
    %v149 = vmul.f32 %v141, 9.954917
    %v150 = vmul.f32 %v142, 9.954917
    %v151 = vmul.f32 %v143, 9.954917
    %v152 = vsel %vm144, %v148, %v140
    %v153 = vsel %vm145, %v149, %v141
    %v154 = vsel %vm146, %v150, %v142
    %v155 = vsel %vm147, %v151, %v143
    %s156 = sadd.s32 0, 0
    %s157 = smul.u32 %s156, 16
    %s158 = sadd.s32 %s157, 16
    %p159 = scmp.le.s32.totalorder %s158, 16
    // Predicated region
    $region22: #{tpu_custom_call.1} parent=1 // pred_check
      %p160 = pneg %p159
    $region23: #{tpu_custom_call.1} parent=1 // pred_check_branch
      %162 = sbr.rel (%p160) target = $region25
    $region24: #{tpu_custom_call.1} parent=1 // pred_region
      %v163 = vld [vmem:[#allocation7] sm:$0xff]
      %v164 = vld [vmem:[#allocation7 + $0x8] sm:$0xff]
      %v165 = vadd.f32 %v152, %v154
      %v166 = vadd.f32 %v153, %v155
      %v167 = vadd.f32 %v163, %v165
      %v168 = vadd.f32 %v164, %v166
      %169 = vst [vmem:[#allocation7] sm:$0xff] %v167
      %170 = vst [vmem:[#allocation7 + $0x8] sm:$0xff] %v168
    $region25: #{tpu_custom_call.1} parent=1 // pred_fallthru
      _
    %p171 = scmp.gt.s32.totalorder %s158, 16
    // Predicated region
    $region26: #{tpu_custom_call.1} parent=1 // pred_check
      %p172 = pneg %p171
    $region27: #{tpu_custom_call.1} parent=1 // pred_check_branch
      %174 = sbr.rel (%p172) target = $region29
    $region28: #{tpu_custom_call.1} parent=1 // pred_region
      %s175 = ssub.s32 16, %s157
      %v176 = vlaneseq
      %v177 = vshrl.u32 %v176, 7
      %v178 = vadd.s32 %v177, 8
      %v179 = vstv %s175
      %vm180 = vcmp.lt.s32.totalorder %v177, %v179
      %vm181 = vcmp.lt.s32.totalorder %v178, %v179
      %v182 = vsel %vm180, %v152, 0.0
      %v183 = vsel %vm180, %v153, 0.0
      %v184 = vsel %vm181, %v154, 0.0
      %v185 = vsel %vm181, %v155, 0.0
      %v186 = vld [vmem:[#allocation7] sm:$0xff]
      %v187 = vld [vmem:[#allocation7 + $0x8] sm:$0xff]
      %v188 = vadd.f32 %v182, %v184
      %v189 = vadd.f32 %v183, %v185
      %v190 = vadd.f32 %v186, %v188
      %v191 = vadd.f32 %v187, %v189
      %192 = vst [vmem:[#allocation7] sm:$0xff] %v190
      %193 = vst [vmem:[#allocation7 + $0x8] sm:$0xff] %v191
    $region29: #{tpu_custom_call.1} parent=1 // pred_fallthru
      _
    // Predicated region
    $region30: #{tpu_custom_call.1} parent=1 // pred_check
      _
    $region31: #{tpu_custom_call.1} parent=1 // pred_check_branch
      %195 = sbr.rel (0) target = $region33
    $region32: #{tpu_custom_call.1} parent=1 // pred_region
      %s197 = ssub.s32 256, 256
      %198 = vsyncadd [#allocation4], %s197
      %s200 = sshll.u32 [#allocation7], 4
      %s201 = int_to_ptr.vmem [resolvable:$true] %s200
      %203 = dma.vmem_to_hbm [thread:$0]  %s201, 256, %s2, [#allocation4]
    $region33: #{tpu_custom_call.1} parent=1 // pred_fallthru
      _
    // Predicated region
    $region34: #{tpu_custom_call.1} parent=1 // pred_check
      _
    $region35: #{tpu_custom_call.1} parent=1 // pred_check_branch
      %205 = sbr.rel (0) target = $region37
    $region36: #{tpu_custom_call.1} parent=1 // pred_region
      %206 = dma.done [#allocation4], 256
    $region37: #{tpu_custom_call.1} parent=1 // pred_fallthru
      _
    %207 = vsyncpa [#allocation3], 1
    %208 = vsyncpa [#allocation6], 1
    %209 = vsyncpa [#allocation4], 1

</llo_original>
